<compile_context>
chip_gen: v5e
topology: v5e:2x2
jax: 0.10.0
libtpu: 0.0.40
codegen_flags: <defaults>
</compile_context>

<pallas_src>
import jax
import jax.numpy as jnp
from jax import lax
from jax.experimental import pallas as pl
from jax.experimental.pallas import tpu as pltpu

SUBLANE = 8  # f32 sublane count


def _lstm_fc_kernel(x_ref, wih_ref, whh_ref, b_ref, wfc_ref, bfc_ref,
                    out_ref, xg_sc):
    """Single-invocation LSTM + FC.

    x_ref  : (T*Bp, I)   time-major, batch-padded input (rows [t*Bp, (t+1)*Bp) = step t)
    wih_ref: (I, 4H)     input->gates weights  (transposed PyTorch weight_ih_l0)
    whh_ref: (H, 4H)     hidden->gates weights (transposed PyTorch weight_hh_l0)
    b_ref  : (1, 4H)     bias_ih + bias_hh
    wfc_ref: (H, O)      fc weight transposed
    bfc_ref: (1, O)      fc bias
    out_ref: (Bp, O)     prediction for the last timestep
    xg_sc  : (T*Bp, 4H)  f32 scratch holding precomputed input projections
    """
    Bp = out_ref.shape[0]
    T = x_ref.shape[0] // Bp
    H = whh_ref.shape[0]

    # One MXU pass for the input contribution of every timestep (+ bias, once).
    xg_sc[...] = (jnp.dot(x_ref[...], wih_ref[...],
                          preferred_element_type=jnp.float32)
                  + b_ref[...])

    h0 = jnp.zeros((Bp, H), jnp.float32)
    c0 = jnp.zeros((Bp, H), jnp.float32)

    def step(t, carry):
        h, c = carry
        base = pl.multiple_of(t * Bp, SUBLANE)
        gates = xg_sc[pl.ds(base, Bp), :] + jnp.dot(
            h, whh_ref[...], preferred_element_type=jnp.float32)   # (Bp, 4H)

        i_g = jax.nn.sigmoid(gates[:, 0 * H:1 * H])
        f_g = jax.nn.sigmoid(gates[:, 1 * H:2 * H])
        g_g = jnp.tanh(gates[:, 2 * H:3 * H])
        o_g = jax.nn.sigmoid(gates[:, 3 * H:4 * H])

        c_new = f_g * c + i_g * g_g
        h_new = o_g * jnp.tanh(c_new)
        return h_new, c_new

    h_last, _ = lax.fori_loop(0, T, step, (h0, c0), unroll=True)

    # last_output = output[:, -1, :]; dropout is identity in eval mode.
    # TODO(synk): training-mode dropout (Bernoulli mask via pltpu PRNG) not implemented.
    pred = (jnp.dot(h_last, wfc_ref[...], preferred_element_type=jnp.float32)
            + bfc_ref[...])
    out_ref[...] = pred.astype(out_ref.dtype)


def lstm_signal_predictor_forward(x, params):
    """x: (batch, seq, input_size) float32 — same convention as the PyTorch module."""
    B, T, I = x.shape
    H = params["w_hh"].shape[0]
    O = params["w_fc"].shape[1]

    # Pad batch to the sublane granularity and go time-major, flattened to 2-D so
    # the kernel sees lane/sublane-friendly tiles and needs no in-kernel reshapes.
    Bp = max(SUBLANE, ((B + SUBLANE - 1) // SUBLANE) * SUBLANE)
    x_tbi = jnp.transpose(x, (1, 0, 2))                       # (T, B, I)
    x_pad = jnp.pad(x_tbi, ((0, 0), (0, Bp - B), (0, 0)))     # (T, Bp, I)
    x_flat = x_pad.reshape(T * Bp, I)                         # (T*Bp, I)

    out = pl.pallas_call(
        _lstm_fc_kernel,
        out_shape=jax.ShapeDtypeStruct((Bp, O), jnp.float32),
        in_specs=[pl.BlockSpec(memory_space=pltpu.MemorySpace.VMEM)] * 6,
        out_specs=pl.BlockSpec(memory_space=pltpu.MemorySpace.VMEM),
        scratch_shapes=[pltpu.VMEM((T * Bp, 4 * H), jnp.float32)],
    )(x_flat, params["w_ih"], params["w_hh"], params["b"],
      params["w_fc"], params["b_fc"])
    return out[:B]


def init_params(key, input_size, hidden_size, output_size):
    """Deterministic synthetic parameters matching the nn.LSTM / nn.Linear shapes."""
    k = jax.random.split(key, 6)
    s = 1.0 / jnp.sqrt(hidden_size)
    # PyTorch stores weight_ih_l0: (4H, I); we keep the transposed (I, 4H) form.
    w_ih = jax.random.uniform(k[0], (input_size, 4 * hidden_size), jnp.float32, -s, s)
    w_hh = jax.random.uniform(k[1], (hidden_size, 4 * hidden_size), jnp.float32, -s, s)
    b_ih = jax.random.uniform(k[2], (1, 4 * hidden_size), jnp.float32, -s, s)
    b_hh = jax.random.uniform(k[3], (1, 4 * hidden_size), jnp.float32, -s, s)
    w_fc = jax.random.uniform(k[4], (hidden_size, output_size), jnp.float32, -s, s)
    b_fc = jax.random.uniform(k[5], (1, output_size), jnp.float32, -s, s)
    return {"w_ih": w_ih, "w_hh": w_hh, "b": b_ih + b_hh,
            "w_fc": w_fc, "b_fc": b_fc}


def reference_forward(x, params):
    """Pure-JAX reference of the same forward pass for validation."""
    B, T, I = x.shape
    H = params["w_hh"].shape[0]
    h = jnp.zeros((B, H), jnp.float32)
    c = jnp.zeros((B, H), jnp.float32)
    for t in range(T):
        gates = x[:, t, :] @ params["w_ih"] + h @ params["w_hh"] + params["b"]
        i_g = jax.nn.sigmoid(gates[:, 0 * H:1 * H])
        f_g = jax.nn.sigmoid(gates[:, 1 * H:2 * H])
        g_g = jnp.tanh(gates[:, 2 * H:3 * H])
        o_g = jax.nn.sigmoid(gates[:, 3 * H:4 * H])
        c = f_g * c + i_g * g_g
        h = o_g * jnp.tanh(c)
    return h @ params["w_fc"] + params["b_fc"]


if __name__ == "__main__":
    batch, seq_len, input_size, hidden_size, output_size = 2, 8, 4, 32, 3

    key = jax.random.PRNGKey(0)
    kx, kp = jax.random.split(key)
    x = jax.random.normal(kx, (batch, seq_len, input_size), jnp.float32)
    params = init_params(kp, input_size, hidden_size, output_size)

    out = lstm_signal_predictor_forward(x, params)
    out = jax.block_until_ready(out)

    ref = reference_forward(x, params)
    assert out.shape == (batch, output_size)
    assert jnp.allclose(out, ref, atol=1e-5, rtol=1e-5), (out, ref)

    print("KERNEL_OK")
</pallas_src>

<mosaic_0001>
module attributes {stable_mosaic.version = 11 : i64} {
  func.func @_lstm_fc_kernel(%arg0: memref<64x4xf32, #tpu.memory_space<vmem>>, %arg1: memref<4x128xf32, #tpu.memory_space<vmem>>, %arg2: memref<32x128xf32, #tpu.memory_space<vmem>>, %arg3: memref<1x128xf32, #tpu.memory_space<vmem>>, %arg4: memref<32x3xf32, #tpu.memory_space<vmem>>, %arg5: memref<1x3xf32, #tpu.memory_space<vmem>>, %arg6: memref<8x3xf32, #tpu.memory_space<vmem>>, %arg7: memref<64x128xf32, #tpu.memory_space<vmem>>) attributes {dimension_semantics = [], scalar_prefetch = 0 : i64, scratch_operands = 1 : i64, tpu.core_type = #tpu.core_type<tc>} {
    %c0 = arith.constant 0 : index
    %c0_0 = arith.constant 0 : index
    %0 = vector.load %arg0[%c0, %c0_0] : memref<64x4xf32, #tpu.memory_space<vmem>>, vector<64x4xf32>
    %c0_1 = arith.constant 0 : index
    %c0_2 = arith.constant 0 : index
    %1 = vector.load %arg1[%c0_1, %c0_2] : memref<4x128xf32, #tpu.memory_space<vmem>>, vector<4x128xf32>
    %cst = arith.constant dense<0.000000e+00> : vector<64x128xf32>
    %2 = tpu.matmul %0, %1, %cst {dimension_numbers = #tpu.dot_dimension_numbers<[1], [0], [0], [1], [0, 0, 1, 1], [], []>} : vector<64x4xf32>, vector<4x128xf32>, vector<64x128xf32> -> vector<64x128xf32>
    %c0_3 = arith.constant 0 : index
    %c0_4 = arith.constant 0 : index
    %3 = vector.load %arg3[%c0_3, %c0_4] : memref<1x128xf32, #tpu.memory_space<vmem>>, vector<1x128xf32>
    %4 = vector.broadcast %3 : vector<1x128xf32> to vector<64x128xf32>
    %5 = arith.addf %2, %4 : vector<64x128xf32>
    %c0_5 = arith.constant 0 : index
    %c0_6 = arith.constant 0 : index
    %6 = vector.load %arg7[%c0_5, %c0_6] : memref<64x128xf32, #tpu.memory_space<vmem>>, vector<64x128xf32>
    tpu.vector_store %arg7[%c0_5, %c0_6], %5 {strides = array<i32>} : memref<64x128xf32, #tpu.memory_space<vmem>>, vector<64x128xf32>,
    %cst_7 = arith.constant 0.000000e+00 : f32
    %7 = vector.broadcast %cst_7 : f32 to vector<8x32xf32>
    %cst_8 = arith.constant 0.000000e+00 : f32
    %8 = vector.broadcast %cst_8 : f32 to vector<8x32xf32>
    %c0_i32 = arith.constant 0 : i32
    %c8_i32 = arith.constant 8 : i32
    %9 = arith.muli %c0_i32, %c8_i32 : i32
    %10 = tpu.assume_multiple %9, 8 : i32
    %11 = arith.index_cast %10 : i32 to index
    %c0_9 = arith.constant 0 : index
    %12 = vector.load %arg7[%11, %c0_9] : memref<64x128xf32, #tpu.memory_space<vmem>>, vector<8x128xf32>
    %c0_10 = arith.constant 0 : index
    %c0_11 = arith.constant 0 : index
    %13 = vector.load %arg2[%c0_10, %c0_11] : memref<32x128xf32, #tpu.memory_space<vmem>>, vector<32x128xf32>
    %cst_12 = arith.constant dense<0.000000e+00> : vector<8x128xf32>
    %14 = tpu.matmul %7, %13, %cst_12 {dimension_numbers = #tpu.dot_dimension_numbers<[1], [0], [0], [1], [0, 0, 1, 1], [], []>} : vector<8x32xf32>, vector<32x128xf32>, vector<8x128xf32> -> vector<8x128xf32>
    %15 = arith.addf %12, %14 : vector<8x128xf32>
    %16 = vector.extract_strided_slice %15 {offsets = [0, 0], sizes = [8, 32], strides = [1, 1]} : vector<8x128xf32> to vector<8x32xf32>
    %17 = arith.negf %16 : vector<8x32xf32>
    %18 = math.exp %17 : vector<8x32xf32>
    %cst_13 = arith.constant 1.000000e+00 : f32
    %19 = vector.broadcast %cst_13 : f32 to vector<8x32xf32>
    %20 = arith.addf %19, %18 : vector<8x32xf32>
    %21 = arith.divf %19, %20 : vector<8x32xf32>
    %22 = vector.extract_strided_slice %15 {offsets = [0, 32], sizes = [8, 32], strides = [1, 1]} : vector<8x128xf32> to vector<8x32xf32>
    %23 = arith.negf %22 : vector<8x32xf32>
    %24 = math.exp %23 : vector<8x32xf32>
    %cst_14 = arith.constant 1.000000e+00 : f32
    %25 = vector.broadcast %cst_14 : f32 to vector<8x32xf32>
    %26 = arith.addf %25, %24 : vector<8x32xf32>
    %27 = arith.divf %25, %26 : vector<8x32xf32>
    %28 = vector.extract_strided_slice %15 {offsets = [0, 64], sizes = [8, 32], strides = [1, 1]} : vector<8x128xf32> to vector<8x32xf32>
    %29 = math.tanh %28 : vector<8x32xf32>
    %30 = vector.extract_strided_slice %15 {offsets = [0, 96], sizes = [8, 32], strides = [1, 1]} : vector<8x128xf32> to vector<8x32xf32>
    %31 = arith.negf %30 : vector<8x32xf32>
    %32 = math.exp %31 : vector<8x32xf32>
    %cst_15 = arith.constant 1.000000e+00 : f32
    %33 = vector.broadcast %cst_15 : f32 to vector<8x32xf32>
    %34 = arith.addf %33, %32 : vector<8x32xf32>
    %35 = arith.divf %33, %34 : vector<8x32xf32>
    %36 = arith.mulf %27, %8 : vector<8x32xf32>
    %37 = arith.mulf %21, %29 : vector<8x32xf32>
    %38 = arith.addf %36, %37 : vector<8x32xf32>
    %39 = math.tanh %38 : vector<8x32xf32>
    %40 = arith.mulf %35, %39 : vector<8x32xf32>
    %c1_i32 = arith.constant 1 : i32
    %c8_i32_16 = arith.constant 8 : i32
    %41 = arith.muli %c1_i32, %c8_i32_16 : i32
    %42 = tpu.assume_multiple %41, 8 : i32
    %43 = arith.index_cast %42 : i32 to index
    %c0_17 = arith.constant 0 : index
    %44 = vector.load %arg7[%43, %c0_17] : memref<64x128xf32, #tpu.memory_space<vmem>>, vector<8x128xf32>
    %c0_18 = arith.constant 0 : index
    %c0_19 = arith.constant 0 : index
    %45 = vector.load %arg2[%c0_18, %c0_19] : memref<32x128xf32, #tpu.memory_space<vmem>>, vector<32x128xf32>
    %cst_20 = arith.constant dense<0.000000e+00> : vector<8x128xf32>
    %46 = tpu.matmul %40, %45, %cst_20 {dimension_numbers = #tpu.dot_dimension_numbers<[1], [0], [0], [1], [0, 0, 1, 1], [], []>} : vector<8x32xf32>, vector<32x128xf32>, vector<8x128xf32> -> vector<8x128xf32>
    %47 = arith.addf %44, %46 : vector<8x128xf32>
    %48 = vector.extract_strided_slice %47 {offsets = [0, 0], sizes = [8, 32], strides = [1, 1]} : vector<8x128xf32> to vector<8x32xf32>
    %49 = arith.negf %48 : vector<8x32xf32>
    %50 = math.exp %49 : vector<8x32xf32>
    %cst_21 = arith.constant 1.000000e+00 : f32
    %51 = vector.broadcast %cst_21 : f32 to vector<8x32xf32>
    %52 = arith.addf %51, %50 : vector<8x32xf32>
    %53 = arith.divf %51, %52 : vector<8x32xf32>
    %54 = vector.extract_strided_slice %47 {offsets = [0, 32], sizes = [8, 32], strides = [1, 1]} : vector<8x128xf32> to vector<8x32xf32>
    %55 = arith.negf %54 : vector<8x32xf32>
    %56 = math.exp %55 : vector<8x32xf32>
    %cst_22 = arith.constant 1.000000e+00 : f32
    %57 = vector.broadcast %cst_22 : f32 to vector<8x32xf32>
    %58 = arith.addf %57, %56 : vector<8x32xf32>
    %59 = arith.divf %57, %58 : vector<8x32xf32>
    %60 = vector.extract_strided_slice %47 {offsets = [0, 64], sizes = [8, 32], strides = [1, 1]} : vector<8x128xf32> to vector<8x32xf32>
    %61 = math.tanh %60 : vector<8x32xf32>
    %62 = vector.extract_strided_slice %47 {offsets = [0, 96], sizes = [8, 32], strides = [1, 1]} : vector<8x128xf32> to vector<8x32xf32>
    %63 = arith.negf %62 : vector<8x32xf32>
    %64 = math.exp %63 : vector<8x32xf32>
    %cst_23 = arith.constant 1.000000e+00 : f32
    %65 = vector.broadcast %cst_23 : f32 to vector<8x32xf32>
    %66 = arith.addf %65, %64 : vector<8x32xf32>
    %67 = arith.divf %65, %66 : vector<8x32xf32>
    %68 = arith.mulf %59, %38 : vector<8x32xf32>
    %69 = arith.mulf %53, %61 : vector<8x32xf32>
    %70 = arith.addf %68, %69 : vector<8x32xf32>
    %71 = math.tanh %70 : vector<8x32xf32>
    %72 = arith.mulf %67, %71 : vector<8x32xf32>
    %c2_i32 = arith.constant 2 : i32
    %c8_i32_24 = arith.constant 8 : i32
    %73 = arith.muli %c2_i32, %c8_i32_24 : i32
    %74 = tpu.assume_multiple %73, 8 : i32
    %75 = arith.index_cast %74 : i32 to index
    %c0_25 = arith.constant 0 : index
    %76 = vector.load %arg7[%75, %c0_25] : memref<64x128xf32, #tpu.memory_space<vmem>>, vector<8x128xf32>
    %c0_26 = arith.constant 0 : index
    %c0_27 = arith.constant 0 : index
    %77 = vector.load %arg2[%c0_26, %c0_27] : memref<32x128xf32, #tpu.memory_space<vmem>>, vector<32x128xf32>
    %cst_28 = arith.constant dense<0.000000e+00> : vector<8x128xf32>
    %78 = tpu.matmul %72, %77, %cst_28 {dimension_numbers = #tpu.dot_dimension_numbers<[1], [0], [0], [1], [0, 0, 1, 1], [], []>} : vector<8x32xf32>, vector<32x128xf32>, vector<8x128xf32> -> vector<8x128xf32>
    %79 = arith.addf %76, %78 : vector<8x128xf32>
    %80 = vector.extract_strided_slice %79 {offsets = [0, 0], sizes = [8, 32], strides = [1, 1]} : vector<8x128xf32> to vector<8x32xf32>
    %81 = arith.negf %80 : vector<8x32xf32>
    %82 = math.exp %81 : vector<8x32xf32>
    %cst_29 = arith.constant 1.000000e+00 : f32
    %83 = vector.broadcast %cst_29 : f32 to vector<8x32xf32>
    %84 = arith.addf %83, %82 : vector<8x32xf32>
    %85 = arith.divf %83, %84 : vector<8x32xf32>
    %86 = vector.extract_strided_slice %79 {offsets = [0, 32], sizes = [8, 32], strides = [1, 1]} : vector<8x128xf32> to vector<8x32xf32>
    %87 = arith.negf %86 : vector<8x32xf32>
    %88 = math.exp %87 : vector<8x32xf32>
    %cst_30 = arith.constant 1.000000e+00 : f32
    %89 = vector.broadcast %cst_30 : f32 to vector<8x32xf32>
    %90 = arith.addf %89, %88 : vector<8x32xf32>
    %91 = arith.divf %89, %90 : vector<8x32xf32>
    %92 = vector.extract_strided_slice %79 {offsets = [0, 64], sizes = [8, 32], strides = [1, 1]} : vector<8x128xf32> to vector<8x32xf32>
    %93 = math.tanh %92 : vector<8x32xf32>
    %94 = vector.extract_strided_slice %79 {offsets = [0, 96], sizes = [8, 32], strides = [1, 1]} : vector<8x128xf32> to vector<8x32xf32>
    %95 = arith.negf %94 : vector<8x32xf32>
    %96 = math.exp %95 : vector<8x32xf32>
    %cst_31 = arith.constant 1.000000e+00 : f32
    %97 = vector.broadcast %cst_31 : f32 to vector<8x32xf32>
    %98 = arith.addf %97, %96 : vector<8x32xf32>
    %99 = arith.divf %97, %98 : vector<8x32xf32>
    %100 = arith.mulf %91, %70 : vector<8x32xf32>
    %101 = arith.mulf %85, %93 : vector<8x32xf32>
    %102 = arith.addf %100, %101 : vector<8x32xf32>
    %103 = math.tanh %102 : vector<8x32xf32>
    %104 = arith.mulf %99, %103 : vector<8x32xf32>
    %c3_i32 = arith.constant 3 : i32
    %c8_i32_32 = arith.constant 8 : i32
    %105 = arith.muli %c3_i32, %c8_i32_32 : i32
    %106 = tpu.assume_multiple %105, 8 : i32
    %107 = arith.index_cast %106 : i32 to index
    %c0_33 = arith.constant 0 : index
    %108 = vector.load %arg7[%107, %c0_33] : memref<64x128xf32, #tpu.memory_space<vmem>>, vector<8x128xf32>
    %c0_34 = arith.constant 0 : index
    %c0_35 = arith.constant 0 : index
    %109 = vector.load %arg2[%c0_34, %c0_35] : memref<32x128xf32, #tpu.memory_space<vmem>>, vector<32x128xf32>
    %cst_36 = arith.constant dense<0.000000e+00> : vector<8x128xf32>
    %110 = tpu.matmul %104, %109, %cst_36 {dimension_numbers = #tpu.dot_dimension_numbers<[1], [0], [0], [1], [0, 0, 1, 1], [], []>} : vector<8x32xf32>, vector<32x128xf32>, vector<8x128xf32> -> vector<8x128xf32>
    %111 = arith.addf %108, %110 : vector<8x128xf32>
    %112 = vector.extract_strided_slice %111 {offsets = [0, 0], sizes = [8, 32], strides = [1, 1]} : vector<8x128xf32> to vector<8x32xf32>
    %113 = arith.negf %112 : vector<8x32xf32>
    %114 = math.exp %113 : vector<8x32xf32>
    %cst_37 = arith.constant 1.000000e+00 : f32
    %115 = vector.broadcast %cst_37 : f32 to vector<8x32xf32>
    %116 = arith.addf %115, %114 : vector<8x32xf32>
    %117 = arith.divf %115, %116 : vector<8x32xf32>
    %118 = vector.extract_strided_slice %111 {offsets = [0, 32], sizes = [8, 32], strides = [1, 1]} : vector<8x128xf32> to vector<8x32xf32>
    %119 = arith.negf %118 : vector<8x32xf32>
    %120 = math.exp %119 : vector<8x32xf32>
    %cst_38 = arith.constant 1.000000e+00 : f32
    %121 = vector.broadcast %cst_38 : f32 to vector<8x32xf32>
    %122 = arith.addf %121, %120 : vector<8x32xf32>
    %123 = arith.divf %121, %122 : vector<8x32xf32>
    %124 = vector.extract_strided_slice %111 {offsets = [0, 64], sizes = [8, 32], strides = [1, 1]} : vector<8x128xf32> to vector<8x32xf32>
    %125 = math.tanh %124 : vector<8x32xf32>
    %126 = vector.extract_strided_slice %111 {offsets = [0, 96], sizes = [8, 32], strides = [1, 1]} : vector<8x128xf32> to vector<8x32xf32>
    %127 = arith.negf %126 : vector<8x32xf32>
    %128 = math.exp %127 : vector<8x32xf32>
    %cst_39 = arith.constant 1.000000e+00 : f32
    %129 = vector.broadcast %cst_39 : f32 to vector<8x32xf32>
    %130 = arith.addf %129, %128 : vector<8x32xf32>
    %131 = arith.divf %129, %130 : vector<8x32xf32>
    %132 = arith.mulf %123, %102 : vector<8x32xf32>
    %133 = arith.mulf %117, %125 : vector<8x32xf32>
    %134 = arith.addf %132, %133 : vector<8x32xf32>
    %135 = math.tanh %134 : vector<8x32xf32>
    %136 = arith.mulf %131, %135 : vector<8x32xf32>
    %c4_i32 = arith.constant 4 : i32
    %c8_i32_40 = arith.constant 8 : i32
    %137 = arith.muli %c4_i32, %c8_i32_40 : i32
    %138 = tpu.assume_multiple %137, 8 : i32
    %139 = arith.index_cast %138 : i32 to index
    %c0_41 = arith.constant 0 : index
    %140 = vector.load %arg7[%139, %c0_41] : memref<64x128xf32, #tpu.memory_space<vmem>>, vector<8x128xf32>
    %c0_42 = arith.constant 0 : index
    %c0_43 = arith.constant 0 : index
    %141 = vector.load %arg2[%c0_42, %c0_43] : memref<32x128xf32, #tpu.memory_space<vmem>>, vector<32x128xf32>
    %cst_44 = arith.constant dense<0.000000e+00> : vector<8x128xf32>
    %142 = tpu.matmul %136, %141, %cst_44 {dimension_numbers = #tpu.dot_dimension_numbers<[1], [0], [0], [1], [0, 0, 1, 1], [], []>} : vector<8x32xf32>, vector<32x128xf32>, vector<8x128xf32> -> vector<8x128xf32>
    %143 = arith.addf %140, %142 : vector<8x128xf32>
    %144 = vector.extract_strided_slice %143 {offsets = [0, 0], sizes = [8, 32], strides = [1, 1]} : vector<8x128xf32> to vector<8x32xf32>
    %145 = arith.negf %144 : vector<8x32xf32>
    %146 = math.exp %145 : vector<8x32xf32>
    %cst_45 = arith.constant 1.000000e+00 : f32
    %147 = vector.broadcast %cst_45 : f32 to vector<8x32xf32>
    %148 = arith.addf %147, %146 : vector<8x32xf32>
    %149 = arith.divf %147, %148 : vector<8x32xf32>
    %150 = vector.extract_strided_slice %143 {offsets = [0, 32], sizes = [8, 32], strides = [1, 1]} : vector<8x128xf32> to vector<8x32xf32>
    %151 = arith.negf %150 : vector<8x32xf32>
    %152 = math.exp %151 : vector<8x32xf32>
    %cst_46 = arith.constant 1.000000e+00 : f32
    %153 = vector.broadcast %cst_46 : f32 to vector<8x32xf32>
    %154 = arith.addf %153, %152 : vector<8x32xf32>
    %155 = arith.divf %153, %154 : vector<8x32xf32>
    %156 = vector.extract_strided_slice %143 {offsets = [0, 64], sizes = [8, 32], strides = [1, 1]} : vector<8x128xf32> to vector<8x32xf32>
    %157 = math.tanh %156 : vector<8x32xf32>
    %158 = vector.extract_strided_slice %143 {offsets = [0, 96], sizes = [8, 32], strides = [1, 1]} : vector<8x128xf32> to vector<8x32xf32>
    %159 = arith.negf %158 : vector<8x32xf32>
    %160 = math.exp %159 : vector<8x32xf32>
    %cst_47 = arith.constant 1.000000e+00 : f32
    %161 = vector.broadcast %cst_47 : f32 to vector<8x32xf32>
    %162 = arith.addf %161, %160 : vector<8x32xf32>
    %163 = arith.divf %161, %162 : vector<8x32xf32>
    %164 = arith.mulf %155, %134 : vector<8x32xf32>
    %165 = arith.mulf %149, %157 : vector<8x32xf32>
    %166 = arith.addf %164, %165 : vector<8x32xf32>
    %167 = math.tanh %166 : vector<8x32xf32>
    %168 = arith.mulf %163, %167 : vector<8x32xf32>
    %c5_i32 = arith.constant 5 : i32
    %c8_i32_48 = arith.constant 8 : i32
    %169 = arith.muli %c5_i32, %c8_i32_48 : i32
    %170 = tpu.assume_multiple %169, 8 : i32
    %171 = arith.index_cast %170 : i32 to index
    %c0_49 = arith.constant 0 : index
    %172 = vector.load %arg7[%171, %c0_49] : memref<64x128xf32, #tpu.memory_space<vmem>>, vector<8x128xf32>
    %c0_50 = arith.constant 0 : index
    %c0_51 = arith.constant 0 : index
    %173 = vector.load %arg2[%c0_50, %c0_51] : memref<32x128xf32, #tpu.memory_space<vmem>>, vector<32x128xf32>
    %cst_52 = arith.constant dense<0.000000e+00> : vector<8x128xf32>
    %174 = tpu.matmul %168, %173, %cst_52 {dimension_numbers = #tpu.dot_dimension_numbers<[1], [0], [0], [1], [0, 0, 1, 1], [], []>} : vector<8x32xf32>, vector<32x128xf32>, vector<8x128xf32> -> vector<8x128xf32>
    %175 = arith.addf %172, %174 : vector<8x128xf32>
    %176 = vector.extract_strided_slice %175 {offsets = [0, 0], sizes = [8, 32], strides = [1, 1]} : vector<8x128xf32> to vector<8x32xf32>
    %177 = arith.negf %176 : vector<8x32xf32>
    %178 = math.exp %177 : vector<8x32xf32>
    %cst_53 = arith.constant 1.000000e+00 : f32
    %179 = vector.broadcast %cst_53 : f32 to vector<8x32xf32>
    %180 = arith.addf %179, %178 : vector<8x32xf32>
    %181 = arith.divf %179, %180 : vector<8x32xf32>
    %182 = vector.extract_strided_slice %175 {offsets = [0, 32], sizes = [8, 32], strides = [1, 1]} : vector<8x128xf32> to vector<8x32xf32>
    %183 = arith.negf %182 : vector<8x32xf32>
    %184 = math.exp %183 : vector<8x32xf32>
    %cst_54 = arith.constant 1.000000e+00 : f32
    %185 = vector.broadcast %cst_54 : f32 to vector<8x32xf32>
    %186 = arith.addf %185, %184 : vector<8x32xf32>
    %187 = arith.divf %185, %186 : vector<8x32xf32>
    %188 = vector.extract_strided_slice %175 {offsets = [0, 64], sizes = [8, 32], strides = [1, 1]} : vector<8x128xf32> to vector<8x32xf32>
    %189 = math.tanh %188 : vector<8x32xf32>
    %190 = vector.extract_strided_slice %175 {offsets = [0, 96], sizes = [8, 32], strides = [1, 1]} : vector<8x128xf32> to vector<8x32xf32>
    %191 = arith.negf %190 : vector<8x32xf32>
    %192 = math.exp %191 : vector<8x32xf32>
    %cst_55 = arith.constant 1.000000e+00 : f32
    %193 = vector.broadcast %cst_55 : f32 to vector<8x32xf32>
    %194 = arith.addf %193, %192 : vector<8x32xf32>
    %195 = arith.divf %193, %194 : vector<8x32xf32>
    %196 = arith.mulf %187, %166 : vector<8x32xf32>
    %197 = arith.mulf %181, %189 : vector<8x32xf32>
    %198 = arith.addf %196, %197 : vector<8x32xf32>
    %199 = math.tanh %198 : vector<8x32xf32>
    %200 = arith.mulf %195, %199 : vector<8x32xf32>
    %c6_i32 = arith.constant 6 : i32
    %c8_i32_56 = arith.constant 8 : i32
    %201 = arith.muli %c6_i32, %c8_i32_56 : i32
    %202 = tpu.assume_multiple %201, 8 : i32
    %203 = arith.index_cast %202 : i32 to index
    %c0_57 = arith.constant 0 : index
    %204 = vector.load %arg7[%203, %c0_57] : memref<64x128xf32, #tpu.memory_space<vmem>>, vector<8x128xf32>
    %c0_58 = arith.constant 0 : index
    %c0_59 = arith.constant 0 : index
    %205 = vector.load %arg2[%c0_58, %c0_59] : memref<32x128xf32, #tpu.memory_space<vmem>>, vector<32x128xf32>
    %cst_60 = arith.constant dense<0.000000e+00> : vector<8x128xf32>
    %206 = tpu.matmul %200, %205, %cst_60 {dimension_numbers = #tpu.dot_dimension_numbers<[1], [0], [0], [1], [0, 0, 1, 1], [], []>} : vector<8x32xf32>, vector<32x128xf32>, vector<8x128xf32> -> vector<8x128xf32>
    %207 = arith.addf %204, %206 : vector<8x128xf32>
    %208 = vector.extract_strided_slice %207 {offsets = [0, 0], sizes = [8, 32], strides = [1, 1]} : vector<8x128xf32> to vector<8x32xf32>
    %209 = arith.negf %208 : vector<8x32xf32>
    %210 = math.exp %209 : vector<8x32xf32>
    %cst_61 = arith.constant 1.000000e+00 : f32
    %211 = vector.broadcast %cst_61 : f32 to vector<8x32xf32>
    %212 = arith.addf %211, %210 : vector<8x32xf32>
    %213 = arith.divf %211, %212 : vector<8x32xf32>
    %214 = vector.extract_strided_slice %207 {offsets = [0, 32], sizes = [8, 32], strides = [1, 1]} : vector<8x128xf32> to vector<8x32xf32>
    %215 = arith.negf %214 : vector<8x32xf32>
    %216 = math.exp %215 : vector<8x32xf32>
    %cst_62 = arith.constant 1.000000e+00 : f32
    %217 = vector.broadcast %cst_62 : f32 to vector<8x32xf32>
    %218 = arith.addf %217, %216 : vector<8x32xf32>
    %219 = arith.divf %217, %218 : vector<8x32xf32>
    %220 = vector.extract_strided_slice %207 {offsets = [0, 64], sizes = [8, 32], strides = [1, 1]} : vector<8x128xf32> to vector<8x32xf32>
    %221 = math.tanh %220 : vector<8x32xf32>
    %222 = vector.extract_strided_slice %207 {offsets = [0, 96], sizes = [8, 32], strides = [1, 1]} : vector<8x128xf32> to vector<8x32xf32>
    %223 = arith.negf %222 : vector<8x32xf32>
    %224 = math.exp %223 : vector<8x32xf32>
    %cst_63 = arith.constant 1.000000e+00 : f32
    %225 = vector.broadcast %cst_63 : f32 to vector<8x32xf32>
    %226 = arith.addf %225, %224 : vector<8x32xf32>
    %227 = arith.divf %225, %226 : vector<8x32xf32>
    %228 = arith.mulf %219, %198 : vector<8x32xf32>
    %229 = arith.mulf %213, %221 : vector<8x32xf32>
    %230 = arith.addf %228, %229 : vector<8x32xf32>
    %231 = math.tanh %230 : vector<8x32xf32>
    %232 = arith.mulf %227, %231 : vector<8x32xf32>
    %c7_i32 = arith.constant 7 : i32
    %c8_i32_64 = arith.constant 8 : i32
    %233 = arith.muli %c7_i32, %c8_i32_64 : i32
    %234 = tpu.assume_multiple %233, 8 : i32
    %235 = arith.index_cast %234 : i32 to index
    %c0_65 = arith.constant 0 : index
    %236 = vector.load %arg7[%235, %c0_65] : memref<64x128xf32, #tpu.memory_space<vmem>>, vector<8x128xf32>
    %c0_66 = arith.constant 0 : index
    %c0_67 = arith.constant 0 : index
    %237 = vector.load %arg2[%c0_66, %c0_67] : memref<32x128xf32, #tpu.memory_space<vmem>>, vector<32x128xf32>
    %cst_68 = arith.constant dense<0.000000e+00> : vector<8x128xf32>
    %238 = tpu.matmul %232, %237, %cst_68 {dimension_numbers = #tpu.dot_dimension_numbers<[1], [0], [0], [1], [0, 0, 1, 1], [], []>} : vector<8x32xf32>, vector<32x128xf32>, vector<8x128xf32> -> vector<8x128xf32>
    %239 = arith.addf %236, %238 : vector<8x128xf32>
    %240 = vector.extract_strided_slice %239 {offsets = [0, 0], sizes = [8, 32], strides = [1, 1]} : vector<8x128xf32> to vector<8x32xf32>
    %241 = arith.negf %240 : vector<8x32xf32>
    %242 = math.exp %241 : vector<8x32xf32>
    %cst_69 = arith.constant 1.000000e+00 : f32
    %243 = vector.broadcast %cst_69 : f32 to vector<8x32xf32>
    %244 = arith.addf %243, %242 : vector<8x32xf32>
    %245 = arith.divf %243, %244 : vector<8x32xf32>
    %246 = vector.extract_strided_slice %239 {offsets = [0, 32], sizes = [8, 32], strides = [1, 1]} : vector<8x128xf32> to vector<8x32xf32>
    %247 = arith.negf %246 : vector<8x32xf32>
    %248 = math.exp %247 : vector<8x32xf32>
    %cst_70 = arith.constant 1.000000e+00 : f32
    %249 = vector.broadcast %cst_70 : f32 to vector<8x32xf32>
    %250 = arith.addf %249, %248 : vector<8x32xf32>
    %251 = arith.divf %249, %250 : vector<8x32xf32>
    %252 = vector.extract_strided_slice %239 {offsets = [0, 64], sizes = [8, 32], strides = [1, 1]} : vector<8x128xf32> to vector<8x32xf32>
    %253 = math.tanh %252 : vector<8x32xf32>
    %254 = vector.extract_strided_slice %239 {offsets = [0, 96], sizes = [8, 32], strides = [1, 1]} : vector<8x128xf32> to vector<8x32xf32>
    %255 = arith.negf %254 : vector<8x32xf32>
    %256 = math.exp %255 : vector<8x32xf32>
    %cst_71 = arith.constant 1.000000e+00 : f32
    %257 = vector.broadcast %cst_71 : f32 to vector<8x32xf32>
    %258 = arith.addf %257, %256 : vector<8x32xf32>
    %259 = arith.divf %257, %258 : vector<8x32xf32>
    %260 = arith.mulf %251, %230 : vector<8x32xf32>
    %261 = arith.mulf %245, %253 : vector<8x32xf32>
    %262 = arith.addf %260, %261 : vector<8x32xf32>
    %263 = math.tanh %262 : vector<8x32xf32>
    %264 = arith.mulf %259, %263 : vector<8x32xf32>
    %c8_i32_72 = arith.constant 8 : i32
    %c0_73 = arith.constant 0 : index
    %c0_74 = arith.constant 0 : index
    %265 = vector.load %arg4[%c0_73, %c0_74] : memref<32x3xf32, #tpu.memory_space<vmem>>, vector<32x3xf32>
    %cst_75 = arith.constant dense<0.000000e+00> : vector<8x3xf32>
    %266 = tpu.matmul %264, %265, %cst_75 {dimension_numbers = #tpu.dot_dimension_numbers<[1], [0], [0], [1], [0, 0, 1, 1], [], []>} : vector<8x32xf32>, vector<32x3xf32>, vector<8x3xf32> -> vector<8x3xf32>
    %c0_76 = arith.constant 0 : index
    %c0_77 = arith.constant 0 : index
    %267 = vector.load %arg5[%c0_76, %c0_77] : memref<1x3xf32, #tpu.memory_space<vmem>>, vector<1x3xf32>
    %268 = vector.broadcast %267 : vector<1x3xf32> to vector<8x3xf32>
    %269 = arith.addf %266, %268 : vector<8x3xf32>
    %c0_78 = arith.constant 0 : index
    %c0_79 = arith.constant 0 : index
    %270 = vector.load %arg6[%c0_78, %c0_79] : memref<8x3xf32, #tpu.memory_space<vmem>>, vector<8x3xf32>
    tpu.vector_store %arg6[%c0_78, %c0_79], %269 {strides = array<i32>} : memref<8x3xf32, #tpu.memory_space<vmem>>, vector<8x3xf32>,
    return
  }
}

</mosaic_0001>

<llo_original>
// kernel: tpu_custom_call.1
$region0: #{tpu_custom_call.1}
  #allocation0 [shape = 'u32[]', space=smem, size = 0x4, offset = 0x4, fixed_abs, tag = 'smem constant byte address 0x4 - core index']
  #allocation1 [shape = 'u32[72,128]{1,0:T(1,128)}', space=vmem, size = 0x9000, scoped, tag = 'internal scratch']
  #allocation2 [shape = 'f32[64,128]{1,0:T(8,128)}', space=vmem, size = 0x8000, scoped, tag = 'scratch operand']
  %s0 = inlined_call_operand.vmem [shape: f32[64,4], index: 0, kind: input, shape index: {}]
  %s1 = inlined_call_operand.vmem [shape: f32[4,128], index: 1, kind: input, shape index: {}]
  %s2 = inlined_call_operand.vmem [shape: f32[32,128], index: 2, kind: input, shape index: {}]
  %s3 = inlined_call_operand.vmem [shape: f32[1,128], index: 3, kind: input, shape index: {}]
  %s4 = inlined_call_operand.vmem [shape: f32[32,3], index: 4, kind: input, shape index: {}]
  %s5 = inlined_call_operand.vmem [shape: f32[1,3], index: 5, kind: input, shape index: {}]
  %s6 = inlined_call_operand.vmem [shape: f32[8,3], index: 6, kind: output, shape index: {}]
  %s7 = sld [smem:[#allocation0]]
  $region34: #{tpu_custom_call.1} parent=0
    _
  %s9 = ssub.s32 1, %s7
  %s10 = scalar_select 0, %s9, %s7
  // Predicated region
  $region2: #{tpu_custom_call.1} parent=0 // pred_check
    _
  $region3: #{tpu_custom_call.1} parent=0 // pred_check_branch
    %12 = sbr.rel (0) target = $region5
  $region4: #{tpu_custom_call.1} parent=0 // pred_region
    _
  $region5: #{tpu_custom_call.1} parent=0 // pred_fallthru
    _
  // Predicated region
  $region6: #{tpu_custom_call.1} parent=0 // pred_check
    _
  $region7: #{tpu_custom_call.1} parent=0 // pred_check_branch
    %14 = sbr.rel (0) target = $region9
  $region8: #{tpu_custom_call.1} parent=0 // pred_region
    _
  $region9: #{tpu_custom_call.1} parent=0 // pred_fallthru
    _
  // Predicated region
  $region10: #{tpu_custom_call.1} parent=0 // pred_check
    _
  $region11: #{tpu_custom_call.1} parent=0 // pred_check_branch
    %16 = sbr.rel (0) target = $region13
  $region12: #{tpu_custom_call.1} parent=0 // pred_region
    _
  $region13: #{tpu_custom_call.1} parent=0 // pred_fallthru
    _
  // Predicated region
  $region14: #{tpu_custom_call.1} parent=0 // pred_check
    _
  $region15: #{tpu_custom_call.1} parent=0 // pred_check_branch
    %18 = sbr.rel (0) target = $region17
  $region16: #{tpu_custom_call.1} parent=0 // pred_region
    _
  $region17: #{tpu_custom_call.1} parent=0 // pred_fallthru
    _
  // Predicated region
  $region18: #{tpu_custom_call.1} parent=0 // pred_check
    _
  $region19: #{tpu_custom_call.1} parent=0 // pred_check_branch
    %20 = sbr.rel (0) target = $region21
  $region20: #{tpu_custom_call.1} parent=0 // pred_region
    _
  $region21: #{tpu_custom_call.1} parent=0 // pred_fallthru
    _
  // Predicated region
  $region22: #{tpu_custom_call.1} parent=0 // pred_check
    _
  $region23: #{tpu_custom_call.1} parent=0 // pred_check_branch
    %22 = sbr.rel (0) target = $region25
  $region24: #{tpu_custom_call.1} parent=0 // pred_region
    _
  $region25: #{tpu_custom_call.1} parent=0 // pred_fallthru
    _
  %v23 = vld [vmem:[%s0] sm:$0xff]
  %v24 = vld [vmem:[%s0 + $0x8] sm:$0xff]
  %v25 = vld [vmem:[%s0 + $0x10] sm:$0xff]
  %v26 = vld [vmem:[%s0 + $0x18] sm:$0xff]
  %v27 = vld [vmem:[%s0 + $0x20] sm:$0xff]
  %v28 = vld [vmem:[%s0 + $0x28] sm:$0xff]
  %v29 = vld [vmem:[%s0 + $0x30] sm:$0xff]
  %v30 = vld [vmem:[%s0 + $0x38] sm:$0xff]
  %v31 = vld [vmem:[%s1] sm:$0xf]
  %v32 = vld [vmem:[%s3] sm:$0x1]
  %v34 = vperm.slane %v32, 0
  %vm36 = vcmask 31744
  %v38 = vsel %vm36, %v23, 0
  %v41 = vsel %vm36, %v24, 0
  %v44 = vsel %vm36, %v25, 0
  %v47 = vsel %vm36, %v26, 0
  %v50 = vsel %vm36, %v27, 0
  %v53 = vsel %vm36, %v28, 0
  %v56 = vsel %vm36, %v29, 0
  %v59 = vsel %vm36, %v30, 0
  %vm61 = vcmask 1043456
  %v63 = vsel %vm61, %v31, 0
  %65 = vmatpush.msra.mxu0 0.0
  %66 = vmatpush.msra.mxu0 0.0
  %67 = vmatpush.msra.mxu0 0.0
  %68 = vmatpush.msra.mxu0 0.0
  %69 = vmatpush.msra.mxu0 0.0
  %70 = vmatpush.msra.mxu0 0.0
  %71 = vmatpush.msra.mxu0 0.0
  %72 = vmatpush.msra.mxu0 0.0
  %73 = vmatpush.msra.mxu0 0.0
  %74 = vmatpush.msra.mxu0 0.0
  %75 = vmatpush.msra.mxu0 0.0
  %76 = vmatpush.msra.mxu0 0.0
  %77 = vmatpush.msra.mxu0 0.0
  %78 = vmatpush.msra.mxu0 0.0
  %79 = vmatpush.msra.mxu0 0.0
  %80 = vmatpush.msra.mxu0 %v63
  %81 = vmatmul.f32.gmra.mxu0 %v38
  %v82 = vpop.f32.mrf.mxu0
  %v83 = vadd.f32 %v34, %v82
  %84 = vmatmul.f32.gmra.mxu0 %v41
  %v85 = vpop.f32.mrf.mxu0
  %v86 = vadd.f32 %v34, %v85
  %87 = vmatmul.f32.gmra.mxu0 %v44
  %v88 = vpop.f32.mrf.mxu0
  %v89 = vadd.f32 %v34, %v88
  %90 = vmatmul.f32.gmra.mxu0 %v47
  %v91 = vpop.f32.mrf.mxu0
  %v92 = vadd.f32 %v34, %v91
  %93 = vmatmul.f32.gmra.mxu0 %v50
  %v94 = vpop.f32.mrf.mxu0
  %v95 = vadd.f32 %v34, %v94
  %96 = vmatmul.f32.gmra.mxu0 %v53
  %v97 = vpop.f32.mrf.mxu0
  %v98 = vadd.f32 %v34, %v97
  %99 = vmatmul.f32.gmra.mxu0 %v56
  %v100 = vpop.f32.mrf.mxu0
  %v101 = vadd.f32 %v34, %v100
  %102 = vmatmul.f32.gmra.mxu0 %v59
  %v103 = vpop.f32.mrf.mxu0
  %v104 = vadd.f32 %v34, %v103
  %105 = vdwg.mxu0
  %106 = vst [vmem:[#allocation2] sm:$0xff] %v83
  %107 = vst [vmem:[#allocation2 + $0x8] sm:$0xff] %v86
  %108 = vst [vmem:[#allocation2 + $0x10] sm:$0xff] %v89
  %109 = vst [vmem:[#allocation2 + $0x18] sm:$0xff] %v92
  %110 = vst [vmem:[#allocation2 + $0x20] sm:$0xff] %v95
  %111 = vst [vmem:[#allocation2 + $0x28] sm:$0xff] %v98
  %112 = vst [vmem:[#allocation2 + $0x30] sm:$0xff] %v101
  %113 = vst [vmem:[#allocation2 + $0x38] sm:$0xff] %v104
  %v114 = vld [vmem:[#allocation2] sm:$0xff]
  %v115 = vld [vmem:[%s2] sm:$0xff]
  %v116 = vld [vmem:[%s2 + $0x8] sm:$0xff]
  %v117 = vld [vmem:[%s2 + $0x10] sm:$0xff]
  %v118 = vld [vmem:[%s2 + $0x18] sm:$0xff]
  %vm119 = vcmask 261120
  %v121 = vsel %vm119, 0.0, 0
  %123 = vmatpush.msra.mxu0 0.0
  %124 = vmatpush.msra.mxu0 0.0
  %125 = vmatpush.msra.mxu0 0.0
  %126 = vmatpush.msra.mxu0 0.0
  %127 = vmatpush.msra.mxu0 0.0
  %128 = vmatpush.msra.mxu0 0.0
  %129 = vmatpush.msra.mxu0 0.0
  %130 = vmatpush.msra.mxu0 0.0
  %131 = vmatpush.msra.mxu0 0.0
  %132 = vmatpush.msra.mxu0 0.0
  %133 = vmatpush.msra.mxu0 0.0
  %134 = vmatpush.msra.mxu0 0.0
  %135 = vmatpush.msra.mxu0 %v118
  %136 = vmatpush.msra.mxu0 %v117
  %137 = vmatpush.msra.mxu0 %v116
  %138 = vmatpush.msra.mxu0 %v115
  %139 = vmatmul.f32.gmra.mxu0 %v121
  %v140 = vpop.f32.mrf.mxu0
  %v141 = vadd.f32 0.0, %v140
  %142 = vdwg.mxu0
  %v143 = vadd.f32 %v114, %v141
  %v144 = vxor.u32 %v143, 2147483648
  %v145 = vmul.f32 %v144, 1.442695
  %v146 = vpow.pop %v145
  %v147 = vadd.f32 %v146, 1.0
  %v148 = vrcp.pop %v147
  %v149 = vmul.f32 %v147, %v148
  %v150 = vsub.f32 1.0, %v149
  %v151 = vmul.f32 %v148, %v150
  %v152 = vadd.f32 %v148, %v151
  %vm153 = vweird.f32 %v147
  %vm154 = vweird.f32 %v148
  %vm155 = vmor %vm153, %vm154
  %v156 = vsel %vm155, %v148, %v152
  %v157 = vand.u32 2147483647, %v147
  %vm158 = vcmp.eq.f32.partialorder %v157, 8.507059e+37
  %v159 = vand.u32 %v147, 2147483648
  %v160 = vor.u32 1.1754944e-38, %v159
  %v161 = vsel %vm158, %v160, %v156
  %v162 = vmul.f32 1.0, %v161
  %v163 = vtanh.pop %v143
  %v164 = vmul.f32 %v162, 0.0
  %166 = vrot.lane.b32.xlu0 %v163, 64
  %v167 = vpop.permute.xlu0 %166
  %v169 = vmul.f32 %v162, %v167
  %171 = vrot.lane.b32.xlu0 %v169, 32
  %v172 = vpop.permute.xlu0 %171
  %v174 = vadd.f32 %v164, %v172
  %v175 = vtanh.pop %v174
  %177 = vrot.lane.b32.xlu0 %v175, 64
  %v178 = vpop.permute.xlu0 %177
  %v180 = vmul.f32 %v162, %v178
  %s181 = scalar_lea.vmem [#allocation2], 8
  %v182 = vld [vmem:[%s181] sm:$0xff]
  %184 = vrot.lane.b32.xlu0 %v180, 32
  %v185 = vpop.permute.xlu0 %184
  %v186 = vsel %vm119, %v185, 0
  %188 = vmatpush.msra.mxu0 0.0
  %189 = vmatpush.msra.mxu0 0.0
  %190 = vmatpush.msra.mxu0 0.0
  %191 = vmatpush.msra.mxu0 0.0
  %192 = vmatpush.msra.mxu0 0.0
  %193 = vmatpush.msra.mxu0 0.0
  %194 = vmatpush.msra.mxu0 0.0
  %195 = vmatpush.msra.mxu0 0.0
  %196 = vmatpush.msra.mxu0 0.0
  %197 = vmatpush.msra.mxu0 0.0
  %198 = vmatpush.msra.mxu0 0.0
  %199 = vmatpush.msra.mxu0 0.0
  %200 = vmatpush.msra.mxu0 %v118
  %201 = vmatpush.msra.mxu0 %v117
  %202 = vmatpush.msra.mxu0 %v116
  %203 = vmatpush.msra.mxu0 %v115
  %204 = vmatmul.f32.gmra.mxu0 %v186
  %v205 = vpop.f32.mrf.mxu0
  %v206 = vadd.f32 0.0, %v205
  %207 = vdwg.mxu0
  %v208 = vadd.f32 %v182, %v206
  %v209 = vxor.u32 %v208, 2147483648
  %v210 = vmul.f32 %v209, 1.442695
  %v211 = vpow.pop %v210
  %v212 = vadd.f32 %v211, 1.0
  %v213 = vrcp.pop %v212
  %v214 = vmul.f32 %v212, %v213
  %v215 = vsub.f32 1.0, %v214
  %v216 = vmul.f32 %v213, %v215
  %v217 = vadd.f32 %v213, %v216
  %vm218 = vweird.f32 %v212
  %vm219 = vweird.f32 %v213
  %vm220 = vmor %vm218, %vm219
  %v221 = vsel %vm220, %v213, %v217
  %v222 = vand.u32 2147483647, %v212
  %vm223 = vcmp.eq.f32.partialorder %v222, 8.507059e+37
  %v224 = vand.u32 %v212, 2147483648
  %v225 = vor.u32 1.1754944e-38, %v224
  %v226 = vsel %vm223, %v225, %v221
  %v227 = vmul.f32 1.0, %v226
  %v228 = vtanh.pop %v208
  %v229 = vmul.f32 %v227, %v174
  %231 = vrot.lane.b32.xlu0 %v228, 64
  %v232 = vpop.permute.xlu0 %231
  %v234 = vmul.f32 %v227, %v232
  %236 = vrot.lane.b32.xlu0 %v234, 32
  %v237 = vpop.permute.xlu0 %236
  %v239 = vadd.f32 %v229, %v237
  %v240 = vtanh.pop %v239
  %242 = vrot.lane.b32.xlu0 %v240, 64
  %v243 = vpop.permute.xlu0 %242
  %v245 = vmul.f32 %v227, %v243
  %s246 = scalar_lea.vmem [#allocation2], 16
  %v247 = vld [vmem:[%s246] sm:$0xff]
  %249 = vrot.lane.b32.xlu0 %v245, 32
  %v250 = vpop.permute.xlu0 %249
  %v251 = vsel %vm119, %v250, 0
  %253 = vmatpush.msra.mxu0 0.0
  %254 = vmatpush.msra.mxu0 0.0
  %255 = vmatpush.msra.mxu0 0.0
  %256 = vmatpush.msra.mxu0 0.0
  %257 = vmatpush.msra.mxu0 0.0
  %258 = vmatpush.msra.mxu0 0.0
  %259 = vmatpush.msra.mxu0 0.0
  %260 = vmatpush.msra.mxu0 0.0
  %261 = vmatpush.msra.mxu0 0.0
  %262 = vmatpush.msra.mxu0 0.0
  %263 = vmatpush.msra.mxu0 0.0
  %264 = vmatpush.msra.mxu0 0.0
  %265 = vmatpush.msra.mxu0 %v118
  %266 = vmatpush.msra.mxu0 %v117
  %267 = vmatpush.msra.mxu0 %v116
  %268 = vmatpush.msra.mxu0 %v115
  %269 = vmatmul.f32.gmra.mxu0 %v251
  %v270 = vpop.f32.mrf.mxu0
  %v271 = vadd.f32 0.0, %v270
  %272 = vdwg.mxu0
  %v273 = vadd.f32 %v247, %v271
  %v274 = vxor.u32 %v273, 2147483648
  %v275 = vmul.f32 %v274, 1.442695
  %v276 = vpow.pop %v275
  %v277 = vadd.f32 %v276, 1.0
  %v278 = vrcp.pop %v277
  %v279 = vmul.f32 %v277, %v278
  %v280 = vsub.f32 1.0, %v279
  %v281 = vmul.f32 %v278, %v280
  %v282 = vadd.f32 %v278, %v281
  %vm283 = vweird.f32 %v277
  %vm284 = vweird.f32 %v278
  %vm285 = vmor %vm283, %vm284
  %v286 = vsel %vm285, %v278, %v282
  %v287 = vand.u32 2147483647, %v277
  %vm288 = vcmp.eq.f32.partialorder %v287, 8.507059e+37
  %v289 = vand.u32 %v277, 2147483648
  %v290 = vor.u32 1.1754944e-38, %v289
  %v291 = vsel %vm288, %v290, %v286
  %v292 = vmul.f32 1.0, %v291
  %v293 = vtanh.pop %v273
  %v294 = vmul.f32 %v292, %v239
  %296 = vrot.lane.b32.xlu0 %v293, 64
  %v297 = vpop.permute.xlu0 %296
  %v299 = vmul.f32 %v292, %v297
  %301 = vrot.lane.b32.xlu0 %v299, 32
  %v302 = vpop.permute.xlu0 %301
  %v304 = vadd.f32 %v294, %v302
  %v305 = vtanh.pop %v304
  %307 = vrot.lane.b32.xlu0 %v305, 64
  %v308 = vpop.permute.xlu0 %307
  %v310 = vmul.f32 %v292, %v308
  %s311 = scalar_lea.vmem [#allocation2], 24
  %v312 = vld [vmem:[%s311] sm:$0xff]
  %314 = vrot.lane.b32.xlu0 %v310, 32
  %v315 = vpop.permute.xlu0 %314
  %v316 = vsel %vm119, %v315, 0
  %318 = vmatpush.msra.mxu0 0.0
  %319 = vmatpush.msra.mxu0 0.0
  %320 = vmatpush.msra.mxu0 0.0
  %321 = vmatpush.msra.mxu0 0.0
  %322 = vmatpush.msra.mxu0 0.0
  %323 = vmatpush.msra.mxu0 0.0
  %324 = vmatpush.msra.mxu0 0.0
  %325 = vmatpush.msra.mxu0 0.0
  %326 = vmatpush.msra.mxu0 0.0
  %327 = vmatpush.msra.mxu0 0.0
  %328 = vmatpush.msra.mxu0 0.0
  %329 = vmatpush.msra.mxu0 0.0
  %330 = vmatpush.msra.mxu0 %v118
  %331 = vmatpush.msra.mxu0 %v117
  %332 = vmatpush.msra.mxu0 %v116
  %333 = vmatpush.msra.mxu0 %v115
  %334 = vmatmul.f32.gmra.mxu0 %v316
  %v335 = vpop.f32.mrf.mxu0
  %v336 = vadd.f32 0.0, %v335
  %337 = vdwg.mxu0
  %v338 = vadd.f32 %v312, %v336
  %v339 = vxor.u32 %v338, 2147483648
  %v340 = vmul.f32 %v339, 1.442695
  %v341 = vpow.pop %v340
  %v342 = vadd.f32 %v341, 1.0
  %v343 = vrcp.pop %v342
  %v344 = vmul.f32 %v342, %v343
  %v345 = vsub.f32 1.0, %v344
  %v346 = vmul.f32 %v343, %v345
  %v347 = vadd.f32 %v343, %v346
  %vm348 = vweird.f32 %v342
  %vm349 = vweird.f32 %v343
  %vm350 = vmor %vm348, %vm349
  %v351 = vsel %vm350, %v343, %v347
  %v352 = vand.u32 2147483647, %v342
  %vm353 = vcmp.eq.f32.partialorder %v352, 8.507059e+37
  %v354 = vand.u32 %v342, 2147483648
  %v355 = vor.u32 1.1754944e-38, %v354
  %v356 = vsel %vm353, %v355, %v351
  %v357 = vmul.f32 1.0, %v356
  %v358 = vtanh.pop %v338
  %v359 = vmul.f32 %v357, %v304
  %361 = vrot.lane.b32.xlu0 %v358, 64
  %v362 = vpop.permute.xlu0 %361
  %v364 = vmul.f32 %v357, %v362
  %366 = vrot.lane.b32.xlu0 %v364, 32
  %v367 = vpop.permute.xlu0 %366
  %v369 = vadd.f32 %v359, %v367
  %v370 = vtanh.pop %v369
  %372 = vrot.lane.b32.xlu0 %v370, 64
  %v373 = vpop.permute.xlu0 %372
  %v375 = vmul.f32 %v357, %v373
  %s376 = scalar_lea.vmem [#allocation2], 32
  %v377 = vld [vmem:[%s376] sm:$0xff]
  %379 = vrot.lane.b32.xlu0 %v375, 32
  %v380 = vpop.permute.xlu0 %379
  %v381 = vsel %vm119, %v380, 0
  %383 = vmatpush.msra.mxu0 0.0
  %384 = vmatpush.msra.mxu0 0.0
  %385 = vmatpush.msra.mxu0 0.0
  %386 = vmatpush.msra.mxu0 0.0
  %387 = vmatpush.msra.mxu0 0.0
  %388 = vmatpush.msra.mxu0 0.0
  %389 = vmatpush.msra.mxu0 0.0
  %390 = vmatpush.msra.mxu0 0.0
  %391 = vmatpush.msra.mxu0 0.0
  %392 = vmatpush.msra.mxu0 0.0
  %393 = vmatpush.msra.mxu0 0.0
  %394 = vmatpush.msra.mxu0 0.0
  %395 = vmatpush.msra.mxu0 %v118
  %396 = vmatpush.msra.mxu0 %v117
  %397 = vmatpush.msra.mxu0 %v116
  %398 = vmatpush.msra.mxu0 %v115
  %399 = vmatmul.f32.gmra.mxu0 %v381
  %v400 = vpop.f32.mrf.mxu0
  %v401 = vadd.f32 0.0, %v400
  %402 = vdwg.mxu0
  %v403 = vadd.f32 %v377, %v401
  %v404 = vxor.u32 %v403, 2147483648
  %v405 = vmul.f32 %v404, 1.442695
  %v406 = vpow.pop %v405
  %v407 = vadd.f32 %v406, 1.0
  %v408 = vrcp.pop %v407
  %v409 = vmul.f32 %v407, %v408
  %v410 = vsub.f32 1.0, %v409
  %v411 = vmul.f32 %v408, %v410
  %v412 = vadd.f32 %v408, %v411
  %vm413 = vweird.f32 %v407
  %vm414 = vweird.f32 %v408
  %vm415 = vmor %vm413, %vm414
  %v416 = vsel %vm415, %v408, %v412
  %v417 = vand.u32 2147483647, %v407
  %vm418 = vcmp.eq.f32.partialorder %v417, 8.507059e+37
  %v419 = vand.u32 %v407, 2147483648
  %v420 = vor.u32 1.1754944e-38, %v419
  %v421 = vsel %vm418, %v420, %v416
  %v422 = vmul.f32 1.0, %v421
  %v423 = vtanh.pop %v403
  %v424 = vmul.f32 %v422, %v369
  %426 = vrot.lane.b32.xlu0 %v423, 64
  %v427 = vpop.permute.xlu0 %426
  %v429 = vmul.f32 %v422, %v427
  %431 = vrot.lane.b32.xlu0 %v429, 32
  %v432 = vpop.permute.xlu0 %431
  %v434 = vadd.f32 %v424, %v432
  %v435 = vtanh.pop %v434
  %437 = vrot.lane.b32.xlu0 %v435, 64
  %v438 = vpop.permute.xlu0 %437
  %v440 = vmul.f32 %v422, %v438
  %s441 = scalar_lea.vmem [#allocation2], 40
  %v442 = vld [vmem:[%s441] sm:$0xff]
  %444 = vrot.lane.b32.xlu0 %v440, 32
  %v445 = vpop.permute.xlu0 %444
  %v446 = vsel %vm119, %v445, 0
  %448 = vmatpush.msra.mxu0 0.0
  %449 = vmatpush.msra.mxu0 0.0
  %450 = vmatpush.msra.mxu0 0.0
  %451 = vmatpush.msra.mxu0 0.0
  %452 = vmatpush.msra.mxu0 0.0
  %453 = vmatpush.msra.mxu0 0.0
  %454 = vmatpush.msra.mxu0 0.0
  %455 = vmatpush.msra.mxu0 0.0
  %456 = vmatpush.msra.mxu0 0.0
  %457 = vmatpush.msra.mxu0 0.0
  %458 = vmatpush.msra.mxu0 0.0
  %459 = vmatpush.msra.mxu0 0.0
  %460 = vmatpush.msra.mxu0 %v118
  %461 = vmatpush.msra.mxu0 %v117
  %462 = vmatpush.msra.mxu0 %v116
  %463 = vmatpush.msra.mxu0 %v115
  %464 = vmatmul.f32.gmra.mxu0 %v446
  %v465 = vpop.f32.mrf.mxu0
  %v466 = vadd.f32 0.0, %v465
  %467 = vdwg.mxu0
  %v468 = vadd.f32 %v442, %v466
  %v469 = vxor.u32 %v468, 2147483648
  %v470 = vmul.f32 %v469, 1.442695
  %v471 = vpow.pop %v470
  %v472 = vadd.f32 %v471, 1.0
  %v473 = vrcp.pop %v472
  %v474 = vmul.f32 %v472, %v473
  %v475 = vsub.f32 1.0, %v474
  %v476 = vmul.f32 %v473, %v475
  %v477 = vadd.f32 %v473, %v476
  %vm478 = vweird.f32 %v472
  %vm479 = vweird.f32 %v473
  %vm480 = vmor %vm478, %vm479
  %v481 = vsel %vm480, %v473, %v477
  %v482 = vand.u32 2147483647, %v472
  %vm483 = vcmp.eq.f32.partialorder %v482, 8.507059e+37
  %v484 = vand.u32 %v472, 2147483648
  %v485 = vor.u32 1.1754944e-38, %v484
  %v486 = vsel %vm483, %v485, %v481
  %v487 = vmul.f32 1.0, %v486
  %v488 = vtanh.pop %v468
  %v489 = vmul.f32 %v487, %v434
  %491 = vrot.lane.b32.xlu0 %v488, 64
  %v492 = vpop.permute.xlu0 %491
  %v494 = vmul.f32 %v487, %v492
  %496 = vrot.lane.b32.xlu0 %v494, 32
  %v497 = vpop.permute.xlu0 %496
  %v499 = vadd.f32 %v489, %v497
  %v500 = vtanh.pop %v499
  %502 = vrot.lane.b32.xlu0 %v500, 64
  %v503 = vpop.permute.xlu0 %502
  %v505 = vmul.f32 %v487, %v503
  %s506 = scalar_lea.vmem [#allocation2], 48
  %v507 = vld [vmem:[%s506] sm:$0xff]
  %509 = vrot.lane.b32.xlu0 %v505, 32
  %v510 = vpop.permute.xlu0 %509
  %v511 = vsel %vm119, %v510, 0
  %513 = vmatpush.msra.mxu0 0.0
  %514 = vmatpush.msra.mxu0 0.0
  %515 = vmatpush.msra.mxu0 0.0
  %516 = vmatpush.msra.mxu0 0.0
  %517 = vmatpush.msra.mxu0 0.0
  %518 = vmatpush.msra.mxu0 0.0
  %519 = vmatpush.msra.mxu0 0.0
  %520 = vmatpush.msra.mxu0 0.0
  %521 = vmatpush.msra.mxu0 0.0
  %522 = vmatpush.msra.mxu0 0.0
  %523 = vmatpush.msra.mxu0 0.0
  %524 = vmatpush.msra.mxu0 0.0
  %525 = vmatpush.msra.mxu0 %v118
  %526 = vmatpush.msra.mxu0 %v117
  %527 = vmatpush.msra.mxu0 %v116
  %528 = vmatpush.msra.mxu0 %v115
  %529 = vmatmul.f32.gmra.mxu0 %v511
  %v530 = vpop.f32.mrf.mxu0
  %v531 = vadd.f32 0.0, %v530
  %532 = vdwg.mxu0
  %v533 = vadd.f32 %v507, %v531
  %v534 = vxor.u32 %v533, 2147483648
  %v535 = vmul.f32 %v534, 1.442695
  %v536 = vpow.pop %v535
  %v537 = vadd.f32 %v536, 1.0
  %v538 = vrcp.pop %v537
  %v539 = vmul.f32 %v537, %v538
  %v540 = vsub.f32 1.0, %v539
  %v541 = vmul.f32 %v538, %v540
  %v542 = vadd.f32 %v538, %v541
  %vm543 = vweird.f32 %v537
  %vm544 = vweird.f32 %v538
  %vm545 = vmor %vm543, %vm544
  %v546 = vsel %vm545, %v538, %v542
  %v547 = vand.u32 2147483647, %v537
  %vm548 = vcmp.eq.f32.partialorder %v547, 8.507059e+37
  %v549 = vand.u32 %v537, 2147483648
  %v550 = vor.u32 1.1754944e-38, %v549
  %v551 = vsel %vm548, %v550, %v546
  %v552 = vmul.f32 1.0, %v551
  %v553 = vtanh.pop %v533
  %v554 = vmul.f32 %v552, %v499
  %556 = vrot.lane.b32.xlu0 %v553, 64
  %v557 = vpop.permute.xlu0 %556
  %v559 = vmul.f32 %v552, %v557
  %561 = vrot.lane.b32.xlu0 %v559, 32
  %v562 = vpop.permute.xlu0 %561
  %v564 = vadd.f32 %v554, %v562
  %v565 = vtanh.pop %v564
  %567 = vrot.lane.b32.xlu0 %v565, 64
  %v568 = vpop.permute.xlu0 %567
  %v570 = vmul.f32 %v552, %v568
  %s571 = scalar_lea.vmem [#allocation2], 56
  %v572 = vld [vmem:[%s571] sm:$0xff]
  %574 = vrot.lane.b32.xlu0 %v570, 32
  %v575 = vpop.permute.xlu0 %574
  %v576 = vsel %vm119, %v575, 0
  %578 = vmatpush.msra.mxu0 0.0
  %579 = vmatpush.msra.mxu0 0.0
  %580 = vmatpush.msra.mxu0 0.0
  %581 = vmatpush.msra.mxu0 0.0
  %582 = vmatpush.msra.mxu0 0.0
  %583 = vmatpush.msra.mxu0 0.0
  %584 = vmatpush.msra.mxu0 0.0
  %585 = vmatpush.msra.mxu0 0.0
  %586 = vmatpush.msra.mxu0 0.0
  %587 = vmatpush.msra.mxu0 0.0
  %588 = vmatpush.msra.mxu0 0.0
  %589 = vmatpush.msra.mxu0 0.0
  %590 = vmatpush.msra.mxu0 %v118
  %591 = vmatpush.msra.mxu0 %v117
  %592 = vmatpush.msra.mxu0 %v116
  %593 = vmatpush.msra.mxu0 %v115
  %594 = vmatmul.f32.gmra.mxu0 %v576
  %v595 = vpop.f32.mrf.mxu0
  %v596 = vadd.f32 0.0, %v595
  %597 = vdwg.mxu0
  %v598 = vadd.f32 %v572, %v596
  %v599 = vxor.u32 %v598, 2147483648
  %v600 = vmul.f32 %v599, 1.442695
  %v601 = vpow.pop %v600
  %v602 = vadd.f32 %v601, 1.0
  %v603 = vrcp.pop %v602
  %v604 = vmul.f32 %v602, %v603
  %v605 = vsub.f32 1.0, %v604
  %v606 = vmul.f32 %v603, %v605
  %v607 = vadd.f32 %v603, %v606
  %vm608 = vweird.f32 %v602
  %vm609 = vweird.f32 %v603
  %vm610 = vmor %vm608, %vm609
  %v611 = vsel %vm610, %v603, %v607
  %v612 = vand.u32 2147483647, %v602
  %vm613 = vcmp.eq.f32.partialorder %v612, 8.507059e+37
  %v614 = vand.u32 %v602, 2147483648
  %v615 = vor.u32 1.1754944e-38, %v614
  %v616 = vsel %vm613, %v615, %v611
  %v617 = vmul.f32 1.0, %v616
  %v618 = vtanh.pop %v598
  %v619 = vmul.f32 %v617, %v564
  %621 = vrot.lane.b32.xlu0 %v618, 64
  %v622 = vpop.permute.xlu0 %621
  %v624 = vmul.f32 %v617, %v622
  %626 = vrot.lane.b32.xlu0 %v624, 32
  %v627 = vpop.permute.xlu0 %626
  %v629 = vadd.f32 %v619, %v627
  %v630 = vtanh.pop %v629
  %632 = vrot.lane.b32.xlu0 %v630, 64
  %v633 = vpop.permute.xlu0 %632
  %v635 = vmul.f32 %v617, %v633
  %v636 = vld [vmem:[%s4] sm:$0xff]
  %v637 = vld [vmem:[%s4 + $0x8] sm:$0xff]
  %v638 = vld [vmem:[%s4 + $0x10] sm:$0xff]
  %v639 = vld [vmem:[%s4 + $0x18] sm:$0xff]
  %v640 = vld [vmem:[%s5] sm:$0x1]
  %v642 = vperm.slane %v640, 0
  %645 = vrot.lane.b32.xlu0 %v635, 32
  %v646 = vpop.permute.xlu0 %645
  %v647 = vsel %vm119, %v646, 0
  %649 = vmatpush.msra.mxu0 0.0
  %650 = vmatpush.msra.mxu0 0.0
  %651 = vmatpush.msra.mxu0 0.0
  %652 = vmatpush.msra.mxu0 0.0
  %653 = vmatpush.msra.mxu0 0.0
  %654 = vmatpush.msra.mxu0 0.0
  %655 = vmatpush.msra.mxu0 0.0
  %656 = vmatpush.msra.mxu0 0.0
  %657 = vmatpush.msra.mxu0 0.0
  %658 = vmatpush.msra.mxu0 0.0
  %659 = vmatpush.msra.mxu0 0.0
  %660 = vmatpush.msra.mxu0 0.0
  %661 = vmatpush.msra.mxu0 %v639
  %662 = vmatpush.msra.mxu0 %v638
  %663 = vmatpush.msra.mxu0 %v637
  %664 = vmatpush.msra.mxu0 %v636
  %665 = vmatmul.f32.gmra.mxu0 %v647
  %v666 = vpop.f32.mrf.mxu0
  %v667 = vadd.f32 %v642, %v666
  %668 = vdwg.mxu0
  %vm669 = vcmask 23552
  %670 = vst.msk [vmem:[%s6] sm:$0xff] %vm669, %v667
  // Predicated region
  $region26: #{tpu_custom_call.1} parent=0 // pred_check
    _
  $region27: #{tpu_custom_call.1} parent=0 // pred_check_branch
    %672 = sbr.rel (0) target = $region29
  $region28: #{tpu_custom_call.1} parent=0 // pred_region
    _
  $region29: #{tpu_custom_call.1} parent=0 // pred_fallthru
    _
  // Predicated region
  $region30: #{tpu_custom_call.1} parent=0 // pred_check
    _
  $region31: #{tpu_custom_call.1} parent=0 // pred_check_branch
    %674 = sbr.rel (0) target = $region33
  $region32: #{tpu_custom_call.1} parent=0 // pred_region
    _
  $region33: #{tpu_custom_call.1} parent=0 // pred_fallthru
    _

</llo_original>
